<compile_context>
chip_gen: v7x
topology: tpu7x:2x2x1
jax: 0.10.0
libtpu: 0.0.40
codegen_flags: <defaults>
</compile_context>

<pallas_src>
import functools

import jax
import jax.numpy as jnp
from jax import lax
from jax.experimental import pallas as pl
from jax.experimental.pallas import tpu as pltpu


_LANE = 128            # pad every feature axis to a multiple of the 128-wide lane dim
_SUBLANE_BF16 = 16     # bf16 sublane packing -> batch tiles in multiples of 16
_MAX_BATCH_TILE = 256  # rows per grid step for large batches (full v6e/v7x MXU tile)


def _round_up(v, m):
    return ((v + m - 1) // m) * m


def _mlp_kernel(x_ref, w1_ref, b1_ref, w2_ref, b2_ref, out_ref, *,
                apply_softmax, valid_out):
    """Fused MLP on one batch tile: relu(x @ W1 + b1) @ W2 + b2 (+ masked softmax).

    x/W1/W2 are bf16 (MXU-native), biases f32, accumulation f32.
    """
    # fc1 + ReLU
    h = jnp.dot(x_ref[...], w1_ref[...], preferred_element_type=jnp.float32)
    h = jnp.maximum(h + b1_ref[...], 0.0)

    # fc2 (cast activations back to bf16 so the second matmul is bf16-native too)
    y = jnp.dot(h.astype(jnp.bfloat16), w2_ref[...],
                preferred_element_type=jnp.float32)
    y = y + b2_ref[...]

    if apply_softmax:
        if valid_out < y.shape[-1]:
            # Zero-padded output lanes must not participate in the softmax.
            col = lax.broadcasted_iota(jnp.int32, y.shape, 1)
            y = jnp.where(col < valid_out, y, -jnp.inf)
        m = jnp.max(y, axis=-1, keepdims=True)
        e = jnp.exp(y - m)
        denom = jnp.sum(e, axis=-1, keepdims=True)
        y = e * pl.reciprocal(denom, approx=True)  # EUP vrcp: effectively free

    out_ref[...] = y.astype(out_ref.dtype)


def _mlp_forward_impl(x, w1_t, b1_p, w2_t, b2_p, output_dim, apply_softmax):
    """x: (N, input_dim) f32; padded/pre-transposed bf16 weights + f32 biases."""
    n, input_dim = x.shape
    in_p, hid_p = w1_t.shape
    out_p = w2_t.shape[1]

    # Pad the batch so every grid step is a full, sublane-aligned tile.
    tile_n = min(_MAX_BATCH_TILE, _round_up(n, _SUBLANE_BF16))
    n_p = _round_up(n, tile_n)
    x_p = jnp.zeros((n_p, in_p), jnp.bfloat16)
    x_p = x_p.at[:n, :input_dim].set(x.astype(jnp.bfloat16))

    grid = (n_p // tile_n,)

    kernel = functools.partial(_mlp_kernel, apply_softmax=apply_softmax,
                               valid_out=output_dim)

    flops = 2 * n_p * (in_p * hid_p + hid_p * out_p)
    bytes_accessed = (x_p.size * 2 + w1_t.size * 2 + w2_t.size * 2
                      + b1_p.size * 4 + b2_p.size * 4 + n_p * out_p * 4)
    transcendentals = n_p * out_p if apply_softmax else 0

    out_padded = pl.pallas_call(
        kernel,
        out_shape=jax.ShapeDtypeStruct((n_p, out_p), jnp.float32),
        grid_spec=pltpu.PrefetchScalarGridSpec(
            num_scalar_prefetch=0,
            grid=grid,
            in_specs=[
                pl.BlockSpec((tile_n, in_p), lambda i: (i, 0)),   # x tile (pipelined)
                pl.BlockSpec((in_p, hid_p), lambda i: (0, 0)),    # W1^T (resident)
                pl.BlockSpec((1, hid_p), lambda i: (0, 0)),       # b1
                pl.BlockSpec((hid_p, out_p), lambda i: (0, 0)),   # W2^T (resident)
                pl.BlockSpec((1, out_p), lambda i: (0, 0)),       # b2
            ],
            out_specs=pl.BlockSpec((tile_n, out_p), lambda i: (i, 0)),
        ),
        compiler_params=pltpu.CompilerParams(
            dimension_semantics=("parallel",)),  # shards batch tiles across v7x TCs
        cost_estimate=pl.CostEstimate(flops=flops,
                                      transcendentals=transcendentals,
                                      bytes_accessed=bytes_accessed),
    )(x_p, w1_t, b1_p, w2_t, b2_p)

    # Strip batch padding and padded output lanes.
    return out_padded[:n, :output_dim]


_mlp_forward_jit = jax.jit(_mlp_forward_impl, static_argnums=(5, 6))


class PallasMLP:
    """Pallas TPU equivalent of torch MultilayerPerceptron(fc1 -> ReLU -> fc2 [-> softmax])."""

    def __init__(self, w1, b1, w2, b2):
        # w1: (hidden, input), b1: (hidden,), w2: (output, hidden), b2: (output,)  [PyTorch layout]
        w1 = jnp.asarray(w1, jnp.float32)
        b1 = jnp.asarray(b1, jnp.float32)
        w2 = jnp.asarray(w2, jnp.float32)
        b2 = jnp.asarray(b2, jnp.float32)
        hidden_dim, input_dim = w1.shape
        output_dim = w2.shape[0]

        in_p = _round_up(input_dim, _LANE)
        hid_p = _round_up(hidden_dim, _LANE)
        out_p = _round_up(output_dim, _LANE)

        # One-time layout plumbing: (out,in) -> (in,out), bf16, zero-padded lane-dense.
        self.w1_t = jnp.zeros((in_p, hid_p), jnp.bfloat16).at[
            :input_dim, :hidden_dim].set(w1.T.astype(jnp.bfloat16))
        self.w2_t = jnp.zeros((hid_p, out_p), jnp.bfloat16).at[
            :hidden_dim, :output_dim].set(w2.T.astype(jnp.bfloat16))
        self.b1 = jnp.zeros((1, hid_p), jnp.float32).at[0, :hidden_dim].set(b1)
        self.b2 = jnp.zeros((1, out_p), jnp.float32).at[0, :output_dim].set(b2)
        self.output_dim = int(output_dim)

    def __call__(self, x, apply_softmax=False):
        return _mlp_forward_jit(x, self.w1_t, self.b1, self.w2_t, self.b2,
                                self.output_dim, bool(apply_softmax))


def _init_linear(kw, kb, out_features, in_features):
    """Match nn.Linear's default U(-1/sqrt(fan_in), +1/sqrt(fan_in)) init."""
    bound = 1.0 / (in_features ** 0.5)
    w = jax.random.uniform(kw, (out_features, in_features), jnp.float32,
                           minval=-bound, maxval=bound)
    b = jax.random.uniform(kb, (out_features,), jnp.float32,
                           minval=-bound, maxval=bound)
    return w, b


if __name__ == "__main__":
    batch, input_dim, hidden_dim, output_dim = 8, 32, 64, 16

    key = jax.random.PRNGKey(0)
    kx, k1w, k1b, k2w, k2b = jax.random.split(key, 5)

    x = jax.random.normal(kx, (batch, input_dim), jnp.float32)
    w1, b1 = _init_linear(k1w, k1b, hidden_dim, input_dim)
    w2, b2 = _init_linear(k2w, k2b, output_dim, hidden_dim)

    mlp = PallasMLP(w1, b1, w2, b2)

    out = jax.block_until_ready(mlp(x, apply_softmax=False))
    out_sm = jax.block_until_ready(mlp(x, apply_softmax=True))
    assert out.shape == (batch, output_dim)
    assert out_sm.shape == (batch, output_dim)

    # Reference with the same numerics as the kernel (bf16 operands, f32 accumulation).
    xb = x.astype(jnp.bfloat16)
    w1b = w1.astype(jnp.bfloat16)
    w2b = w2.astype(jnp.bfloat16)
    h_ref = jnp.maximum(
        jnp.dot(xb, w1b.T, preferred_element_type=jnp.float32) + b1, 0.0)
    y_ref = jnp.dot(h_ref.astype(jnp.bfloat16), w2b.T,
                    preferred_element_type=jnp.float32) + b2
    y_ref_sm = jax.nn.softmax(y_ref, axis=1)

    # Full-f32 torch-equivalent reference (loose tolerance: operands are bf16).
    y_f32 = jnp.maximum(x @ w1.T + b1, 0.0) @ w2.T + b2
    y_f32_sm = jax.nn.softmax(y_f32, axis=1)

    assert jnp.allclose(out, y_ref, atol=2e-3, rtol=2e-2), "mismatch vs bf16 reference"
    assert jnp.allclose(out_sm, y_ref_sm, atol=5e-3, rtol=2e-2), "softmax mismatch vs bf16 reference"
    assert jnp.allclose(out, y_f32, atol=5e-2, rtol=5e-2), "mismatch vs f32 reference"
    assert jnp.allclose(out_sm, y_f32_sm, atol=3e-2, rtol=3e-2), "softmax mismatch vs f32 reference"

    print("KERNEL_OK")
</pallas_src>

<mosaic_0001>
module attributes {stable_mosaic.version = 11 : i64} {
  func.func @_mlp_kernel(%arg0: i32, %arg1: memref<16x128xbf16, #tpu.memory_space<vmem>>, %arg2: memref<128x128xbf16, #tpu.memory_space<vmem>>, %arg3: memref<1x128xf32, #tpu.memory_space<vmem>>, %arg4: memref<128x128xbf16, #tpu.memory_space<vmem>>, %arg5: memref<1x128xf32, #tpu.memory_space<vmem>>, %arg6: memref<16x128xf32, #tpu.memory_space<vmem>>) attributes {dimension_semantics = [#tpu.dimension_semantics<parallel>], iteration_bounds = array<i64: 1>, scalar_prefetch = 0 : i64, scratch_operands = 0 : i64, tpu.core_type = #tpu.core_type<tc>, window_params = [{transform_indices = @transform_0, window_bounds = array<i64: 16, 128>}, {pipeline_mode = #tpu.pipeline_mode<synchronous>, transform_indices = @transform_1, window_bounds = array<i64: 128, 128>}, {pipeline_mode = #tpu.pipeline_mode<synchronous>, transform_indices = @transform_2, window_bounds = array<i64: 1, 128>}, {pipeline_mode = #tpu.pipeline_mode<synchronous>, transform_indices = @transform_3, window_bounds = array<i64: 128, 128>}, {pipeline_mode = #tpu.pipeline_mode<synchronous>, transform_indices = @transform_4, window_bounds = array<i64: 1, 128>}, {transform_indices = @transform_5, window_bounds = array<i64: 16, 128>}]} {
    %c0 = arith.constant 0 : index
    %c0_0 = arith.constant 0 : index
    %0 = vector.load %arg1[%c0, %c0_0] : memref<16x128xbf16, #tpu.memory_space<vmem>>, vector<16x128xbf16>
    %c0_1 = arith.constant 0 : index
    %c0_2 = arith.constant 0 : index
    %1 = vector.load %arg2[%c0_1, %c0_2] : memref<128x128xbf16, #tpu.memory_space<vmem>>, vector<128x128xbf16>
    %cst = arith.constant dense<0.000000e+00> : vector<16x128xf32>
    %2 = tpu.matmul %0, %1, %cst {dimension_numbers = #tpu.dot_dimension_numbers<[1], [0], [0], [1], [0, 0, 1, 1], [], []>} : vector<16x128xbf16>, vector<128x128xbf16>, vector<16x128xf32> -> vector<16x128xf32>
    %c0_3 = arith.constant 0 : index
    %c0_4 = arith.constant 0 : index
    %3 = vector.load %arg3[%c0_3, %c0_4] : memref<1x128xf32, #tpu.memory_space<vmem>>, vector<1x128xf32>
    %4 = vector.broadcast %3 : vector<1x128xf32> to vector<16x128xf32>
    %5 = arith.addf %2, %4 : vector<16x128xf32>
    %cst_5 = arith.constant 0.000000e+00 : f32
    %6 = vector.broadcast %cst_5 : f32 to vector<16x128xf32>
    %7 = arith.maximumf %5, %6 : vector<16x128xf32>
    %8 = arith.truncf %7 : vector<16x128xf32> to vector<16x128xbf16>
    %c0_6 = arith.constant 0 : index
    %c0_7 = arith.constant 0 : index
    %9 = vector.load %arg4[%c0_6, %c0_7] : memref<128x128xbf16, #tpu.memory_space<vmem>>, vector<128x128xbf16>
    %cst_8 = arith.constant dense<0.000000e+00> : vector<16x128xf32>
    %10 = tpu.matmul %8, %9, %cst_8 {dimension_numbers = #tpu.dot_dimension_numbers<[1], [0], [0], [1], [0, 0, 1, 1], [], []>} : vector<16x128xbf16>, vector<128x128xbf16>, vector<16x128xf32> -> vector<16x128xf32>
    %c0_9 = arith.constant 0 : index
    %c0_10 = arith.constant 0 : index
    %11 = vector.load %arg5[%c0_9, %c0_10] : memref<1x128xf32, #tpu.memory_space<vmem>>, vector<1x128xf32>
    %12 = vector.broadcast %11 : vector<1x128xf32> to vector<16x128xf32>
    %13 = arith.addf %10, %12 : vector<16x128xf32>
    %c0_11 = arith.constant 0 : index
    %c0_12 = arith.constant 0 : index
    %14 = vector.load %arg6[%c0_11, %c0_12] : memref<16x128xf32, #tpu.memory_space<vmem>>, vector<16x128xf32>
    tpu.vector_store %arg6[%c0_11, %c0_12], %13 {strides = array<i32>} : memref<16x128xf32, #tpu.memory_space<vmem>>, vector<16x128xf32>,
    return
  }
  func.func @transform_0(%arg0: i32) -> (i32, i32) {
    %c0_i32 = arith.constant 0 : i32
    %c0_i32_0 = arith.constant 0 : i32
    return %arg0, %c0_i32 : i32, i32
  }
  func.func @transform_1(%arg0: i32) -> (i32, i32) {
    %c0_i32 = arith.constant 0 : i32
    %c0_i32_0 = arith.constant 0 : i32
    %c0_i32_1 = arith.constant 0 : i32
    return %c0_i32, %c0_i32_0 : i32, i32
  }
  func.func @transform_2(%arg0: i32) -> (i32, i32) {
    %c0_i32 = arith.constant 0 : i32
    %c0_i32_0 = arith.constant 0 : i32
    %c0_i32_1 = arith.constant 0 : i32
    return %c0_i32, %c0_i32_0 : i32, i32
  }
  func.func @transform_3(%arg0: i32) -> (i32, i32) {
    %c0_i32 = arith.constant 0 : i32
    %c0_i32_0 = arith.constant 0 : i32
    %c0_i32_1 = arith.constant 0 : i32
    return %c0_i32, %c0_i32_0 : i32, i32
  }
  func.func @transform_4(%arg0: i32) -> (i32, i32) {
    %c0_i32 = arith.constant 0 : i32
    %c0_i32_0 = arith.constant 0 : i32
    %c0_i32_1 = arith.constant 0 : i32
    return %c0_i32, %c0_i32_0 : i32, i32
  }
  func.func @transform_5(%arg0: i32) -> (i32, i32) {
    %c0_i32 = arith.constant 0 : i32
    %c0_i32_0 = arith.constant 0 : i32
    return %arg0, %c0_i32 : i32, i32
  }
}

</mosaic_0001>

<llo_original>
// kernel: _mlp_forward_impl.1
$region0: #{_mlp_forward_impl.1}
  #allocation0 [shape = 'u32[]', space=smem, size = 0x4, offset = 0x4, fixed_abs, tag = 'smem constant byte address 0x4 - core index']
  #allocation1 [shape = 'u32[144,128]{1,0:T(1,128)}', space=vmem, size = 0x12000, scoped, tag = 'internal scratch']
  %s0 = inlined_call_operand.vmem [shape: bf16[16,128], index: 0, kind: input, shape index: {}]
  %s1 = inlined_call_operand.hbm [shape: bf16[128,128], index: 1, kind: input, shape index: {}]
  %s2 = inlined_call_operand.vmem [shape: f32[1,128], index: 2, kind: input, shape index: {}]
  %s3 = inlined_call_operand.hbm [shape: bf16[128,128], index: 3, kind: input, shape index: {}]
  %s4 = inlined_call_operand.vmem [shape: f32[1,128], index: 4, kind: input, shape index: {}]
  %s5 = inlined_call_operand.vmem [shape: f32[16,128], index: 5, kind: output, shape index: {}]
  %s6 = sld [smem:[#allocation0]]
  $region38: #{_mlp_forward_impl.1} parent=0
    _
  %s8 = ssub.s32 1, %s6
  %s9 = scalar_select 0, %s8, %s6
  $region1: #{_mlp_forward_impl.1} parent=0
    #allocation2 [shape = 'u8[32768]{0}', space=vmem, size = 0x8000, scoped, tag = 'input window, operand 1, single buffered']
    #allocation3 [shape = 's32[1]{0}', space=sflag, size = 0x4, scoped, tag = 'scoped memory for _mlp_forward_impl.1']
    #allocation4 [shape = 'u8[32768]{0}', space=vmem, size = 0x8000, scoped, tag = 'input window, operand 3, single buffered']
    #allocation5 [shape = 's32[1]{0}', space=sflag, size = 0x4, scoped, tag = 'scoped memory for _mlp_forward_impl.1']
    %10 = vsyncpa [#allocation3], 0
    %11 = vsyncpa [#allocation5], 0
    // Predicated region
    $region2: #{_mlp_forward_impl.1} parent=1 // pred_check
      _
    $region3: #{_mlp_forward_impl.1} parent=1 // pred_check_branch
      %13 = sbr.rel (0) target = $region5
    $region4: #{_mlp_forward_impl.1} parent=1 // pred_region
      _
    $region5: #{_mlp_forward_impl.1} parent=1 // pred_fallthru
      _
    // Predicated region
    $region6: #{_mlp_forward_impl.1} parent=1 // pred_check
      _
    $region7: #{_mlp_forward_impl.1} parent=1 // pred_check_branch
      %15 = sbr.rel (0) target = $region9
    $region8: #{_mlp_forward_impl.1} parent=1 // pred_region
      %s17 = ssub.s32 1024, 1024
      %18 = vsyncadd [#allocation3], %s17
      %s19 = sshll.u32 [#allocation2], 4
      %s20 = int_to_ptr.vmem [resolvable:$true] %s19
      %25 = dma.hbm_to_vmem [thread:$0]  %s1, 1024, %s20, [#allocation3], 64, 64, 4
    $region9: #{_mlp_forward_impl.1} parent=1 // pred_fallthru
      _
    // Predicated region
    $region10: #{_mlp_forward_impl.1} parent=1 // pred_check
      _
    $region11: #{_mlp_forward_impl.1} parent=1 // pred_check_branch
      %27 = sbr.rel (0) target = $region13
    $region12: #{_mlp_forward_impl.1} parent=1 // pred_region
      _
    $region13: #{_mlp_forward_impl.1} parent=1 // pred_fallthru
      _
    // Predicated region
    $region14: #{_mlp_forward_impl.1} parent=1 // pred_check
      _
    $region15: #{_mlp_forward_impl.1} parent=1 // pred_check_branch
      %29 = sbr.rel (0) target = $region17
    $region16: #{_mlp_forward_impl.1} parent=1 // pred_region
      %s31 = ssub.s32 1024, 1024
      %32 = vsyncadd [#allocation5], %s31
      %s33 = sshll.u32 [#allocation4], 4
      %s34 = int_to_ptr.vmem [resolvable:$true] %s33
      %39 = dma.hbm_to_vmem [thread:$0]  %s3, 1024, %s34, [#allocation5], 64, 64, 4
    $region17: #{_mlp_forward_impl.1} parent=1 // pred_fallthru
      _
    // Predicated region
    $region18: #{_mlp_forward_impl.1} parent=1 // pred_check
      _
    $region19: #{_mlp_forward_impl.1} parent=1 // pred_check_branch
      %41 = sbr.rel (0) target = $region21
    $region20: #{_mlp_forward_impl.1} parent=1 // pred_region
      _
    $region21: #{_mlp_forward_impl.1} parent=1 // pred_fallthru
      _
    // Predicated region
    $region22: #{_mlp_forward_impl.1} parent=1 // pred_check
      _
    $region23: #{_mlp_forward_impl.1} parent=1 // pred_check_branch
      %43 = sbr.rel (0) target = $region25
    $region24: #{_mlp_forward_impl.1} parent=1 // pred_region
      %44 = dma.done [#allocation3], 1024
    $region25: #{_mlp_forward_impl.1} parent=1 // pred_fallthru
      _
    // Predicated region
    $region26: #{_mlp_forward_impl.1} parent=1 // pred_check
      _
    $region27: #{_mlp_forward_impl.1} parent=1 // pred_check_branch
      %46 = sbr.rel (0) target = $region29
    $region28: #{_mlp_forward_impl.1} parent=1 // pred_region
      %47 = dma.done [#allocation5], 1024
    $region29: #{_mlp_forward_impl.1} parent=1 // pred_fallthru
      _
    %v49 = vld [vmem:[%s0] sm:$0xf]
    %v50 = vld [vmem:[%s0 + $0x4] sm:$0xf]
    %v51 = vld [vmem:[#allocation2] sm:$0xf]
    %v52 = vld [vmem:[#allocation2 + $0x4] sm:$0xf]
    %v53 = vld [vmem:[#allocation2 + $0x8] sm:$0xf]
    %v54 = vld [vmem:[#allocation2 + $0xc] sm:$0xf]
    %v55 = vld [vmem:[#allocation2 + $0x10] sm:$0xf]
    %v56 = vld [vmem:[#allocation2 + $0x14] sm:$0xf]
    %v57 = vld [vmem:[#allocation2 + $0x18] sm:$0xf]
    %v58 = vld [vmem:[#allocation2 + $0x1c] sm:$0xf]
    %v59 = vld [vmem:[#allocation2 + $0x20] sm:$0xf]
    %v60 = vld [vmem:[#allocation2 + $0x24] sm:$0xf]
    %v61 = vld [vmem:[#allocation2 + $0x28] sm:$0xf]
    %v62 = vld [vmem:[#allocation2 + $0x2c] sm:$0xf]
    %v63 = vld [vmem:[#allocation2 + $0x30] sm:$0xf]
    %v64 = vld [vmem:[#allocation2 + $0x34] sm:$0xf]
    %v65 = vld [vmem:[#allocation2 + $0x38] sm:$0xf]
    %v66 = vld [vmem:[#allocation2 + $0x3c] sm:$0xf]
    %v67 = vld [vmem:[%s2] sm:$0x1]
    %v69 = vlaneseq
    %v70 = vshrl.u32 %v69, 7
    %v71 = vsub.s32 0, %v70
    %v72 = vrot.slane %v67, %v71
    %v76 = vunpack.c.l.b16 %v49
    %v77 = vunpack.c.l.b16 %v50
    %v78 = vpack.c.b16 %v77, %v76
    %v96 = vunpack.c.l.b16 %v51
    %v97 = vunpack.c.l.b16 %v52
    %v98 = vunpack.c.l.b16 %v53
    %v99 = vunpack.c.l.b16 %v54
    %v100 = vunpack.c.l.b16 %v55
    %v101 = vunpack.c.l.b16 %v56
    %v102 = vunpack.c.l.b16 %v57
    %v103 = vunpack.c.l.b16 %v58
    %v104 = vunpack.c.l.b16 %v59
    %v105 = vunpack.c.l.b16 %v60
    %v106 = vunpack.c.l.b16 %v61
    %v107 = vunpack.c.l.b16 %v62
    %v108 = vunpack.c.l.b16 %v63
    %v109 = vunpack.c.l.b16 %v64
    %v110 = vunpack.c.l.b16 %v65
    %v111 = vunpack.c.l.b16 %v66
    %v112 = vpack.c.b16 %v97, %v96
    %v113 = vpack.c.b16 %v99, %v98
    %v114 = vpack.c.b16 %v101, %v100
    %v115 = vpack.c.b16 %v103, %v102
    %v116 = vpack.c.b16 %v105, %v104
    %v117 = vpack.c.b16 %v107, %v106
    %v118 = vpack.c.b16 %v109, %v108
    %v119 = vpack.c.b16 %v111, %v110
    %128 = vmatprep.subr.bf16.mxu0 0
    %129 = vmatpush1.bf16.msra.mxu0 %v112
    %130 = vmatprep.subr.bf16.mxu0 0
    %131 = vmatpush1.bf16.msra.mxu0 %v113
    %132 = vmatprep.subr.bf16.mxu0 0
    %133 = vmatpush1.bf16.msra.mxu0 %v114
    %134 = vmatprep.subr.bf16.mxu0 0
    %135 = vmatpush1.bf16.msra.mxu0 %v115
    %136 = vmatprep.subr.bf16.mxu0 0
    %137 = vmatpush1.bf16.msra.mxu0 %v116
    %138 = vmatprep.subr.bf16.mxu0 0
    %139 = vmatpush1.bf16.msra.mxu0 %v117
    %140 = vmatprep.subr.bf16.mxu0 0
    %141 = vmatpush1.bf16.msra.mxu0 %v118
    %142 = vmatprep.subr.bf16.mxu0 0
    %143 = vmatpush1.bf16.msra.mxu0 %v119
    %144 = vmatprep.subr.bf16.mxu0 0
    %145 = vmatpush1.bf16.msra.mxu0 0
    %146 = vmatprep.subr.bf16.mxu0 0
    %147 = vmatpush1.bf16.msra.mxu0 0
    %148 = vmatprep.subr.bf16.mxu0 0
    %149 = vmatpush1.bf16.msra.mxu0 0
    %150 = vmatprep.subr.bf16.mxu0 0
    %151 = vmatpush1.bf16.msra.mxu0 0
    %152 = vmatprep.subr.bf16.mxu0 0
    %153 = vmatpush1.bf16.msra.mxu0 0
    %154 = vmatprep.subr.bf16.mxu0 0
    %155 = vmatpush1.bf16.msra.mxu0 0
    %156 = vmatprep.subr.bf16.mxu0 0
    %157 = vmatpush1.bf16.msra.mxu0 0
    %158 = vmatprep.subr.bf16.mxu0 0
    %159 = vmatpush1.bf16.msra.mxu0 0
    %160 = vmatprep.mubr.bf16.mxu0 0
    %161 = vmatmul.mubr.bf16.gmra.mrb[0].mxu0 %v78
    %v162 = vpop.f32.mrb[0].mxu0
    %v163 = vadd.f32 %v72, %v162
    %v164 = vpop.f32.mrb[0].mxu0
    %v165 = vpop.f32.mrb[0].mxu0
    %v166 = vadd.f32 %v72, %v165
    %v167 = vpop.f32.mrb[0].mxu0
    %168 = vdwg.mxu0
    %v169 = vmax.f32 %v163, 0.0
    %v170 = vmax.f32 %v166, 0.0
    %v171 = vpack.c.bf16 %v170, %v169
    %v172 = vld [vmem:[#allocation4] sm:$0xf]
    %v173 = vld [vmem:[#allocation4 + $0x4] sm:$0xf]
    %v174 = vld [vmem:[#allocation4 + $0x8] sm:$0xf]
    %v175 = vld [vmem:[#allocation4 + $0xc] sm:$0xf]
    %v176 = vld [vmem:[#allocation4 + $0x10] sm:$0xf]
    %v177 = vld [vmem:[#allocation4 + $0x14] sm:$0xf]
    %v178 = vld [vmem:[#allocation4 + $0x18] sm:$0xf]
    %v179 = vld [vmem:[#allocation4 + $0x1c] sm:$0xf]
    %v180 = vld [vmem:[#allocation4 + $0x20] sm:$0xf]
    %v181 = vld [vmem:[#allocation4 + $0x24] sm:$0xf]
    %v182 = vld [vmem:[#allocation4 + $0x28] sm:$0xf]
    %v183 = vld [vmem:[#allocation4 + $0x2c] sm:$0xf]
    %v184 = vld [vmem:[#allocation4 + $0x30] sm:$0xf]
    %v185 = vld [vmem:[#allocation4 + $0x34] sm:$0xf]
    %v186 = vld [vmem:[#allocation4 + $0x38] sm:$0xf]
    %v187 = vld [vmem:[#allocation4 + $0x3c] sm:$0xf]
    %v188 = vld [vmem:[%s4] sm:$0x1]
    %v190 = vlaneseq
    %v191 = vshrl.u32 %v190, 7
    %v192 = vsub.s32 0, %v191
    %v193 = vrot.slane %v188, %v192
    %v211 = vunpack.c.l.b16 %v172
    %v212 = vunpack.c.l.b16 %v173
    %v213 = vunpack.c.l.b16 %v174
    %v214 = vunpack.c.l.b16 %v175
    %v215 = vunpack.c.l.b16 %v176
    %v216 = vunpack.c.l.b16 %v177
    %v217 = vunpack.c.l.b16 %v178
    %v218 = vunpack.c.l.b16 %v179
    %v219 = vunpack.c.l.b16 %v180
    %v220 = vunpack.c.l.b16 %v181
    %v221 = vunpack.c.l.b16 %v182
    %v222 = vunpack.c.l.b16 %v183
    %v223 = vunpack.c.l.b16 %v184
    %v224 = vunpack.c.l.b16 %v185
    %v225 = vunpack.c.l.b16 %v186
    %v226 = vunpack.c.l.b16 %v187
    %v227 = vpack.c.b16 %v212, %v211
    %v228 = vpack.c.b16 %v214, %v213
    %v229 = vpack.c.b16 %v216, %v215
    %v230 = vpack.c.b16 %v218, %v217
    %v231 = vpack.c.b16 %v220, %v219
    %v232 = vpack.c.b16 %v222, %v221
    %v233 = vpack.c.b16 %v224, %v223
    %v234 = vpack.c.b16 %v226, %v225
    %243 = vmatprep.subr.bf16.mxu0 0
    %244 = vmatpush1.bf16.msra.mxu0 %v227
    %245 = vmatprep.subr.bf16.mxu0 0
    %246 = vmatpush1.bf16.msra.mxu0 %v228
    %247 = vmatprep.subr.bf16.mxu0 0
    %248 = vmatpush1.bf16.msra.mxu0 %v229
    %249 = vmatprep.subr.bf16.mxu0 0
    %250 = vmatpush1.bf16.msra.mxu0 %v230
    %251 = vmatprep.subr.bf16.mxu0 0
    %252 = vmatpush1.bf16.msra.mxu0 %v231
    %253 = vmatprep.subr.bf16.mxu0 0
    %254 = vmatpush1.bf16.msra.mxu0 %v232
    %255 = vmatprep.subr.bf16.mxu0 0
    %256 = vmatpush1.bf16.msra.mxu0 %v233
    %257 = vmatprep.subr.bf16.mxu0 0
    %258 = vmatpush1.bf16.msra.mxu0 %v234
    %259 = vmatprep.subr.bf16.mxu0 0
    %260 = vmatpush1.bf16.msra.mxu0 0
    %261 = vmatprep.subr.bf16.mxu0 0
    %262 = vmatpush1.bf16.msra.mxu0 0
    %263 = vmatprep.subr.bf16.mxu0 0
    %264 = vmatpush1.bf16.msra.mxu0 0
    %265 = vmatprep.subr.bf16.mxu0 0
    %266 = vmatpush1.bf16.msra.mxu0 0
    %267 = vmatprep.subr.bf16.mxu0 0
    %268 = vmatpush1.bf16.msra.mxu0 0
    %269 = vmatprep.subr.bf16.mxu0 0
    %270 = vmatpush1.bf16.msra.mxu0 0
    %271 = vmatprep.subr.bf16.mxu0 0
    %272 = vmatpush1.bf16.msra.mxu0 0
    %273 = vmatprep.subr.bf16.mxu0 0
    %274 = vmatpush1.bf16.msra.mxu0 0
    %275 = vmatprep.mubr.bf16.mxu0 0
    %276 = vmatmul.mubr.bf16.gmra.mrb[0].mxu0 %v171
    %v277 = vpop.f32.mrb[0].mxu0
    %v278 = vadd.f32 %v193, %v277
    %v279 = vpop.f32.mrb[0].mxu0
    %v280 = vpop.f32.mrb[0].mxu0
    %v281 = vadd.f32 %v193, %v280
    %v282 = vpop.f32.mrb[0].mxu0
    %283 = vdwg.mxu0
    %284 = vst [vmem:[%s5] sm:$0xff] %v278
    %285 = vst [vmem:[%s5 + $0x8] sm:$0xff] %v281
    // Predicated region
    $region30: #{_mlp_forward_impl.1} parent=1 // pred_check
      _
    $region31: #{_mlp_forward_impl.1} parent=1 // pred_check_branch
      %287 = sbr.rel (0) target = $region33
    $region32: #{_mlp_forward_impl.1} parent=1 // pred_region
      _
    $region33: #{_mlp_forward_impl.1} parent=1 // pred_fallthru
      _
    // Predicated region
    $region34: #{_mlp_forward_impl.1} parent=1 // pred_check
      _
    $region35: #{_mlp_forward_impl.1} parent=1 // pred_check_branch
      %289 = sbr.rel (0) target = $region37
    $region36: #{_mlp_forward_impl.1} parent=1 // pred_region
      _
    $region37: #{_mlp_forward_impl.1} parent=1 // pred_fallthru
      _
    %290 = vsyncpa [#allocation3], 1
    %291 = vsyncpa [#allocation5], 1

</llo_original>
